<compile_context>
chip_gen: v6e
topology: v6e:2x2x1
jax: 0.10.0
libtpu: 0.0.40
codegen_flags: <defaults>
</compile_context>

<pallas_src>
import numpy as np
import jax
import jax.numpy as jnp
from jax.experimental import pallas as pl
from jax.experimental.pallas import tpu as pltpu

MAX_Z = 118
_LANE = 128                       # vreg lane width
_SUBLANE = 8                      # vreg sublane count (32-bit)
_ROW_QUANTUM = _SUBLANE * _LANE   # 1024 atoms: tile granule (keeps sublane-dense blocks)
_MAX_TN = 131072                  # atoms / grid step (<= 4 MiB int32 output block)
_SPLIT_TN = 32768                 # force >= 2 tiles once n128 >= 2*_SPLIT_TN (megacore)
_PALLAS_MIN_ATOMS = 16384         # below this, "auto" uses the fusible plain-JAX compare


def _round_up(x: int, m: int) -> int:
    return ((x + m - 1) // m) * m


def _cdiv(x: int, m: int) -> int:
    return (x + m - 1) // m


def _make_one_hot_t_kernel(elements, out_dtype):
    """Kernel with the element list baked in as compile-time constants."""
    elems = [int(z) for z in elements]

    def kernel(z_ref, out_ref):
        # z_ref:   (tr, 128)      int32 — atoms dense on (sublane, lane)
        # out_ref: (C, tr, 128)   out_dtype — transposed one-hot tile
        z = z_ref[...]
        for c, zc in enumerate(elems):          # C ~ 4..10: fully unrolled VPU compares
            out_ref[c] = (z == zc).astype(out_ref.dtype)

    return kernel


class ZToOneHot:
    """JAX/Pallas port of graph_pes ZToOneHot (lane-dense transposed compute)."""

    def __init__(self, elements, dtype=jnp.int8):
        self.elements = [int(z) for z in elements]
        self.num_classes = len(self.elements)
        self.dtype = dtype  # int8 default (writeback-bound op); override per call

        z_to_index = np.full((MAX_Z + 1,), -1, dtype=np.int32)
        for i, z in enumerate(self.elements):
            z_to_index[z] = i
        self.z_to_index = jnp.asarray(z_to_index)          # parity / embed()
        self._elems_row = jnp.asarray(self.elements, dtype=jnp.int32)

    # ----------------------------------------------------------------- host
    def validate(self, Z) -> None:
        """Host-side, eager-only replica of the torch module's ValueErrors."""
        # TODO(synk): data-dependent raising has no in-kernel equivalent; under jit
        # an invalid Z silently yields an all-zero row instead of raising.
        Z_np = np.asarray(jax.device_get(Z))
        if (Z_np > MAX_Z).any():
            bad = sorted(set(Z_np[Z_np > MAX_Z].tolist()))
            raise ValueError(f"ZToOneHot received an atomic number is too large: {bad}.")
        idx = np.asarray(self.z_to_index)[Z_np]
        if (idx < 0).any():
            bad = sorted(set(Z_np[idx < 0].tolist()))
            raise ValueError(
                "ZToOneHot received an atomic number that is not in the model's "
                f"element list: {bad}.")

    # --------------------------------------------------------------- device
    def _tiling(self, n128: int, max_tile_atoms: int):
        grid_n = _cdiv(n128, max_tile_atoms)
        if grid_n == 1 and n128 >= 2 * _SPLIT_TN:
            grid_n = 2                                # let megacore shard 2 TCs (v7x)
        if grid_n == 1:
            return 1, n128                            # single tile == full array dims
        tn = _round_up(_cdiv(n128, grid_n), _ROW_QUANTUM)
        return _cdiv(n128, tn), tn

    def _one_hot_pallas_t(self, Z, out_dtype, max_tile_atoms):
        """Transposed one-hot (C, n_pad) via Pallas; atoms dense on lanes/sublanes."""
        N = int(Z.shape[0])
        C = self.num_classes
        n128 = _round_up(N, _LANE)
        grid_n, tn = self._tiling(n128, max_tile_atoms)
        n_pad = grid_n * tn
        rows, tr = n_pad // _LANE, tn // _LANE

        # Pad with -1 (never a valid atomic number) and reshape to the dense 2-D
        # layout; this is one cheap fused XLA op over int32 Z.
        z2d = jnp.pad(Z.astype(jnp.int32), (0, n_pad - N), constant_values=-1)
        z2d = z2d.reshape(rows, _LANE)

        out3d = pl.pallas_call(
            _make_one_hot_t_kernel(self.elements, out_dtype),
            out_shape=jax.ShapeDtypeStruct((C, rows, _LANE), out_dtype),
            grid=(grid_n,),
            in_specs=[pl.BlockSpec((tr, _LANE), lambda i: (i, 0))],
            out_specs=pl.BlockSpec((C, tr, _LANE), lambda i: (0, i, 0)),
            compiler_params=pltpu.CompilerParams(
                dimension_semantics=("parallel",),    # v7x: shard tiles over 2 TCs
            ),
        )(z2d)
        return out3d.reshape(C, n_pad)

    def __call__(self, Z, *, dtype=None, transposed=False, use_pallas="auto",
                 validate=False, max_tile_atoms=_MAX_TN):
        out_dtype = self.dtype if dtype is None else dtype
        if validate and not isinstance(Z, jax.core.Tracer):
            self.validate(Z)

        Z = jnp.asarray(Z)
        N = int(Z.shape[0])
        C = self.num_classes
        if N == 0:
            return jnp.zeros((C, 0) if transposed else (0, C), dtype=out_dtype)

        if use_pallas == "auto":
            use_pallas = N >= _PALLAS_MIN_ATOMS
        if not use_pallas:
            # Fusible plain-JAX path: XLA folds the compare into the consumer —
            # no materialized one-hot, no kernel-launch overhead (review item 1).
            zi = Z.astype(jnp.int32)
            if transposed:
                return (self._elems_row[:, None] == zi[None, :]).astype(out_dtype)
            return (zi[:, None] == self._elems_row[None, :]).astype(out_dtype)

        out_t = self._one_hot_pallas_t(Z, out_dtype, max_tile_atoms)
        if transposed:
            return out_t[:, :N]       # lane-dense (C, N): no transpose pass
        # (N, C) parity with the torch module; this re-layout is one extra XLA pass —
        # prefer transposed=True or embed() in perf-critical consumers (review item 2).
        return out_t[:, :N].T

    # ------------------------------------------------------------ consumers
    def embed(self, Z, W):
        """Drop-in for `one_hot(Z) @ W` as a row gather (review item 1)."""
        idx = self.z_to_index[jnp.asarray(Z).astype(jnp.int32)]
        rows = jnp.take(jnp.asarray(W), jnp.maximum(idx, 0), axis=0)
        return jnp.where((idx >= 0)[:, None], rows, jnp.zeros((), dtype=rows.dtype))


if __name__ == "__main__":
    elements = [1, 6, 7, 8]  # H, C, N, O
    module = ZToOneHot(elements)

    k0, k1, k2, k3 = jax.random.split(jax.random.PRNGKey(0), 4)
    elem_arr = jnp.asarray(elements, dtype=jnp.int32)

    def ref_one_hot(Z, dtype):
        return jax.nn.one_hot(module.z_to_index[Z], module.num_classes, dtype=dtype)

    # --- case 1: Pallas path, default int8 output, (N, C) orientation ------------
    Z1 = elem_arr[jax.random.randint(k0, (16,), 0, len(elements))]
    out1 = jax.block_until_ready(module(Z1, use_pallas=True))
    assert out1.shape == (16, 4) and out1.dtype == jnp.int8, (out1.shape, out1.dtype)
    np.testing.assert_array_equal(np.asarray(out1), np.asarray(ref_one_hot(Z1, jnp.int8)))

    # --- case 2: Pallas path, non-128-aligned N, transposed (C, N) int32 ---------
    Z2 = elem_arr[jax.random.randint(k1, (300,), 0, len(elements))]
    out2 = jax.block_until_ready(
        module(Z2, use_pallas=True, transposed=True, dtype=jnp.int32))
    assert out2.shape == (4, 300) and out2.dtype == jnp.int32, (out2.shape, out2.dtype)
    np.testing.assert_array_equal(np.asarray(out2),
                                  np.asarray(ref_one_hot(Z2, jnp.int32)).T)

    # --- case 3: Pallas path with a multi-tile grid + tail padding ---------------
    Z3 = elem_arr[jax.random.randint(k2, (2500,), 0, len(elements))]
    out3 = jax.block_until_ready(module(Z3, use_pallas=True, max_tile_atoms=1024))
    assert out3.shape == (2500, 4), out3.shape
    np.testing.assert_array_equal(np.asarray(out3), np.asarray(ref_one_hot(Z3, jnp.int8)))

    # --- case 4: "auto" path (small N -> fusible plain-JAX compare) --------------
    out4 = jax.block_until_ready(module(Z2))
    np.testing.assert_array_equal(np.asarray(out4), np.asarray(ref_one_hot(Z2, jnp.int8)))

    # --- case 5: embed() == one_hot @ W via row gather ---------------------------
    W = jax.random.normal(k3, (len(elements), 32), dtype=jnp.float32)
    emb = jax.block_until_ready(module.embed(Z2, W))
    idx_np = np.asarray(module.z_to_index)[np.asarray(Z2)]
    np.testing.assert_array_equal(np.asarray(emb), np.asarray(W)[idx_np])

    print("KERNEL_OK")
</pallas_src>

<mosaic_0001>
module attributes {stable_mosaic.version = 11 : i64} {
  func.func @kernel(%arg0: i32, %arg1: memref<1x128xi32, #tpu.memory_space<vmem>>, %arg2: memref<4x1x128xi8, #tpu.memory_space<vmem>>) attributes {dimension_semantics = [#tpu.dimension_semantics<parallel>], iteration_bounds = array<i64: 1>, scalar_prefetch = 0 : i64, scratch_operands = 0 : i64, tpu.core_type = #tpu.core_type<tc>, window_params = [{transform_indices = @transform_0, window_bounds = array<i64: 1, 128>}, {transform_indices = @transform_1, window_bounds = array<i64: 4, 1, 128>}]} {
    %c0 = arith.constant 0 : index
    %c0_0 = arith.constant 0 : index
    %0 = vector.load %arg1[%c0, %c0_0] : memref<1x128xi32, #tpu.memory_space<vmem>>, vector<1x128xi32>
    %c1_i32 = arith.constant 1 : i32
    %1 = vector.broadcast %c1_i32 : i32 to vector<1x128xi32>
    %2 = arith.cmpi eq, %0, %1 : vector<1x128xi32>
    %3 = arith.extui %2 : vector<1x128xi1> to vector<1x128xi8>
    %c0_1 = arith.constant 0 : index
    %c0_2 = arith.constant 0 : index
    %c0_3 = arith.constant 0 : index
    %4 = vector.load %arg2[%c0_1, %c0_2, %c0_3] : memref<4x1x128xi8, #tpu.memory_space<vmem>>, vector<1x1x128xi8>
    %5 = vector.shape_cast %4 : vector<1x1x128xi8> to vector<1x128xi8>
    %6 = vector.shape_cast %3 : vector<1x128xi8> to vector<1x1x128xi8>
    tpu.vector_store %arg2[%c0_1, %c0_2, %c0_3], %6 {strides = array<i32>} : memref<4x1x128xi8, #tpu.memory_space<vmem>>, vector<1x1x128xi8>,
    %c6_i32 = arith.constant 6 : i32
    %7 = vector.broadcast %c6_i32 : i32 to vector<1x128xi32>
    %8 = arith.cmpi eq, %0, %7 : vector<1x128xi32>
    %9 = arith.extui %8 : vector<1x128xi1> to vector<1x128xi8>
    %c1 = arith.constant 1 : index
    %c0_4 = arith.constant 0 : index
    %c0_5 = arith.constant 0 : index
    %10 = vector.load %arg2[%c1, %c0_4, %c0_5] : memref<4x1x128xi8, #tpu.memory_space<vmem>>, vector<1x1x128xi8>
    %11 = vector.shape_cast %10 : vector<1x1x128xi8> to vector<1x128xi8>
    %12 = vector.shape_cast %9 : vector<1x128xi8> to vector<1x1x128xi8>
    tpu.vector_store %arg2[%c1, %c0_4, %c0_5], %12 {strides = array<i32>} : memref<4x1x128xi8, #tpu.memory_space<vmem>>, vector<1x1x128xi8>,
    %c7_i32 = arith.constant 7 : i32
    %13 = vector.broadcast %c7_i32 : i32 to vector<1x128xi32>
    %14 = arith.cmpi eq, %0, %13 : vector<1x128xi32>
    %15 = arith.extui %14 : vector<1x128xi1> to vector<1x128xi8>
    %c2 = arith.constant 2 : index
    %c0_6 = arith.constant 0 : index
    %c0_7 = arith.constant 0 : index
    %16 = vector.load %arg2[%c2, %c0_6, %c0_7] : memref<4x1x128xi8, #tpu.memory_space<vmem>>, vector<1x1x128xi8>
    %17 = vector.shape_cast %16 : vector<1x1x128xi8> to vector<1x128xi8>
    %18 = vector.shape_cast %15 : vector<1x128xi8> to vector<1x1x128xi8>
    tpu.vector_store %arg2[%c2, %c0_6, %c0_7], %18 {strides = array<i32>} : memref<4x1x128xi8, #tpu.memory_space<vmem>>, vector<1x1x128xi8>,
    %c8_i32 = arith.constant 8 : i32
    %19 = vector.broadcast %c8_i32 : i32 to vector<1x128xi32>
    %20 = arith.cmpi eq, %0, %19 : vector<1x128xi32>
    %21 = arith.extui %20 : vector<1x128xi1> to vector<1x128xi8>
    %c3 = arith.constant 3 : index
    %c0_8 = arith.constant 0 : index
    %c0_9 = arith.constant 0 : index
    %22 = vector.load %arg2[%c3, %c0_8, %c0_9] : memref<4x1x128xi8, #tpu.memory_space<vmem>>, vector<1x1x128xi8>
    %23 = vector.shape_cast %22 : vector<1x1x128xi8> to vector<1x128xi8>
    %24 = vector.shape_cast %21 : vector<1x128xi8> to vector<1x1x128xi8>
    tpu.vector_store %arg2[%c3, %c0_8, %c0_9], %24 {strides = array<i32>} : memref<4x1x128xi8, #tpu.memory_space<vmem>>, vector<1x1x128xi8>,
    return
  }
  func.func @transform_0(%arg0: i32) -> (i32, i32) {
    %c0_i32 = arith.constant 0 : i32
    %c0_i32_0 = arith.constant 0 : i32
    return %arg0, %c0_i32 : i32, i32
  }
  func.func @transform_1(%arg0: i32) -> (i32, i32, i32) {
    %c0_i32 = arith.constant 0 : i32
    %c0_i32_0 = arith.constant 0 : i32
    %c0_i32_1 = arith.constant 0 : i32
    return %c0_i32, %arg0, %c0_i32_0 : i32, i32, i32
  }
}

</mosaic_0001>

<llo_original>
// kernel: tpu_custom_call.1
$region0: #{tpu_custom_call.1}
  #allocation0 [shape = 'u32[]', space=smem, size = 0x4, offset = 0x4, fixed_abs, tag = 'smem constant byte address 0x4 - core index']
  #allocation1 [shape = 'u32[144,128]{1,0:T(1,128)}', space=vmem, size = 0x12000, scoped, tag = 'internal scratch']
  %s0 = inlined_call_operand.hbm [shape: s32[1,128], index: 0, kind: input, shape index: {}]
  %s1 = inlined_call_operand.vmem [shape: s8[4,1,128], index: 1, kind: output, shape index: {}]
  %s2 = sld [smem:[#allocation0]]
  $region18: #{tpu_custom_call.1} parent=0
    _
  %s4 = ssub.s32 1, %s2
  %s5 = scalar_select 0, %s4, %s2
  $region1: #{tpu_custom_call.1} parent=0
    #allocation2 [shape = 'u8[512]{0}', space=vmem, size = 0x400, scoped, tag = 'input window, operand 0, single buffered']
    #allocation3 [shape = 's32[1]{0}', space=sflag, size = 0x4, scoped, tag = 'scoped memory for tpu_custom_call.1']
    %6 = vsyncpa [#allocation3], 0
    // Predicated region
    $region2: #{tpu_custom_call.1} parent=1 // pred_check
      _
    $region3: #{tpu_custom_call.1} parent=1 // pred_check_branch
      %8 = sbr.rel (0) target = $region5
    $region4: #{tpu_custom_call.1} parent=1 // pred_region
      %s10 = ssub.s32 16, 16
      %11 = vsyncadd [#allocation3], %s10
      %s13 = sshll.u32 [#allocation2], 4
      %s14 = int_to_ptr.vmem [resolvable:$true] %s13
      %16 = dma.hbm_to_vmem [thread:$0]  %s0, 16, %s14, [#allocation3]
    $region5: #{tpu_custom_call.1} parent=1 // pred_fallthru
      _
    // Predicated region
    $region6: #{tpu_custom_call.1} parent=1 // pred_check
      _
    $region7: #{tpu_custom_call.1} parent=1 // pred_check_branch
      %18 = sbr.rel (0) target = $region9
    $region8: #{tpu_custom_call.1} parent=1 // pred_region
      %19 = dma.done [#allocation3], 16
    $region9: #{tpu_custom_call.1} parent=1 // pred_fallthru
      _
    %v22 = vld [vmem:[#allocation2] sm:$0x1]
    %vm23 = vcmp.eq.s32.totalorder %v22, 1
    %v24 = vsel %vm23, 1, 0
    %v25 = vpack.c.b16 %v24, %v24
    %v26 = vpack.c.b8 %v25, %v25
    %vm27 = vnez %v26
    %v28 = vsel %vm27, 16843009, 0
    %vm29 = vcmask 1040384
    %vm30 = vsmask.f32 0
    %vm31 = vmand %vm29, %vm30
    %v32 = vld [vmem:[%s1] sm:$0x1]
    %v33 = vsel %vm31, %v28, %v32
    %34 = vst [vmem:[%s1] sm:$0x1] %v33
    %vm35 = vcmp.eq.s32.totalorder %v22, 6
    %v36 = vsel %vm35, 1, 0
    %v37 = vpack.c.b16 %v36, %v36
    %v38 = vpack.c.b8 %v37, %v37
    %vm39 = vnez %v38
    %v40 = vsel %vm39, 16843009, 0
    %s41 = scalar_lea.vmem %s1, 1
    %v42 = vld [vmem:[%s41] sm:$0x1]
    %v43 = vsel %vm31, %v40, %v42
    %44 = vst [vmem:[%s41] sm:$0x1] %v43
    %vm45 = vcmp.eq.s32.totalorder %v22, 7
    %v46 = vsel %vm45, 1, 0
    %v47 = vpack.c.b16 %v46, %v46
    %v48 = vpack.c.b8 %v47, %v47
    %vm49 = vnez %v48
    %v50 = vsel %vm49, 16843009, 0
    %s51 = scalar_lea.vmem %s1, 2
    %v52 = vld [vmem:[%s51] sm:$0x1]
    %v53 = vsel %vm31, %v50, %v52
    %54 = vst [vmem:[%s51] sm:$0x1] %v53
    %vm55 = vcmp.eq.s32.totalorder %v22, 8
    %v56 = vsel %vm55, 1, 0
    %v57 = vpack.c.b16 %v56, %v56
    %v58 = vpack.c.b8 %v57, %v57
    %vm59 = vnez %v58
    %v60 = vsel %vm59, 16843009, 0
    %s61 = scalar_lea.vmem %s1, 3
    %v62 = vld [vmem:[%s61] sm:$0x1]
    %v63 = vsel %vm31, %v60, %v62
    %64 = vst [vmem:[%s61] sm:$0x1] %v63
    // Predicated region
    $region10: #{tpu_custom_call.1} parent=1 // pred_check
      _
    $region11: #{tpu_custom_call.1} parent=1 // pred_check_branch
      %66 = sbr.rel (0) target = $region13
    $region12: #{tpu_custom_call.1} parent=1 // pred_region
      _
    $region13: #{tpu_custom_call.1} parent=1 // pred_fallthru
      _
    // Predicated region
    $region14: #{tpu_custom_call.1} parent=1 // pred_check
      _
    $region15: #{tpu_custom_call.1} parent=1 // pred_check_branch
      %68 = sbr.rel (0) target = $region17
    $region16: #{tpu_custom_call.1} parent=1 // pred_region
      _
    $region17: #{tpu_custom_call.1} parent=1 // pred_fallthru
      _
    %69 = vsyncpa [#allocation3], 1

</llo_original>
